<compile_context>
chip_gen: v5e
topology: v5e:2x2
jax: 0.10.0
libtpu: 0.0.40
codegen_flags: <defaults>
</compile_context>

<pallas_src>
import jax
import jax.numpy as jnp
from jax.experimental import pallas as pl
from jax.experimental.pallas import tpu as pltpu

N_SPEAKERS = 2
NUM_RELATIONS = 2 * N_SPEAKERS ** 2   # 8
NUM_BASES = 30
LANE = 128


def _rup(x, m):
    return ((x + m - 1) // m) * m


# ----------------------------- Pallas kernel --------------------------------
def gcn_kernel(x_ref, adj_rel_ref, inv_deg_ref, adj_all_ref,
               wcat_ref, bias1_ref, w2_ref, b2_ref, out_ref):
    h1p = bias1_ref.shape[-1]
    nrel = wcat_ref.shape[-1] // h1p - 1          # static: (R+1)*H1P columns in wcat

    x = x_ref[0]                                                    # [NP, GP]

    # ---- conv1 (RGCNConv): all relation messages + root term, one lane-dense matmul
    xw = jnp.dot(x, wcat_ref[...], preferred_element_type=jnp.float32)   # [NP, (R+1)*H1P]
    # stack per-relation blocks along the contraction axis -> single K=R*NP matmul
    xw_stack = jnp.concatenate(
        [xw[:, r * h1p:(r + 1) * h1p] for r in range(nrel)], axis=0)     # [R*NP, H1P]
    aggr = jnp.dot(adj_rel_ref[0], xw_stack,
                   preferred_element_type=jnp.float32)                   # [NP, H1P]
    h1 = (aggr * inv_deg_ref[0]                    # scatter_mean (1/max(deg,1))
          + xw[:, nrel * h1p:]                     # x @ root
          + bias1_ref[...])                        # bias

    # ---- conv2 (GraphConv): neighbor-sum and self linears fused (K = 2*H1P)
    ah = jnp.dot(adj_all_ref[0], h1, preferred_element_type=jnp.float32)  # [NP, H1P]
    m = jnp.concatenate([ah, h1], axis=1).astype(w2_ref.dtype)            # [NP, 2*H1P]
    out_ref[0] = (jnp.dot(m, w2_ref[...], preferred_element_type=jnp.float32)
                  + b2_ref[...])


# --------------------------- parameter packing --------------------------------
def pack_gcn_params(params, g_dim, h1_dim, h2_dim, compute_dtype=jnp.float32):
    """Fuse basis-decomposed relation weights + root into one lane-padded W_cat, and
    the GraphConv neighbor/self weights into one W2. Hoistable (once per model)."""
    GP, H1P, H2P = _rup(g_dim, LANE), _rup(h1_dim, LANE), _rup(h2_dim, LANE)
    R = NUM_RELATIONS

    w_rel = jnp.einsum("rb,bgh->rgh", params["att"], params["basis"]).astype(jnp.float32)
    w_rel_pad = jnp.zeros((R, GP, H1P), jnp.float32).at[:, :g_dim, :h1_dim].set(w_rel)
    root_pad = jnp.zeros((GP, H1P), jnp.float32).at[:g_dim, :h1_dim].set(
        params["root"].astype(jnp.float32))
    # wcat[:, r*H1P:(r+1)*H1P] = W_r ; last block = root
    wcat = jnp.concatenate(
        [jnp.transpose(w_rel_pad, (1, 0, 2)).reshape(GP, R * H1P), root_pad], axis=1)

    bias1 = jnp.zeros((1, H1P), jnp.float32).at[0, :h1_dim].set(
        params["bias1"].astype(jnp.float32))

    w_neigh_pad = jnp.zeros((H1P, H2P), jnp.float32).at[:h1_dim, :h2_dim].set(
        params["w_neigh"].astype(jnp.float32))
    w_lin_pad = jnp.zeros((H1P, H2P), jnp.float32).at[:h1_dim, :h2_dim].set(
        params["w_lin"].astype(jnp.float32))
    w2 = jnp.concatenate([w_neigh_pad, w_lin_pad], axis=0)                # [2*H1P, H2P]
    b2 = jnp.zeros((1, H2P), jnp.float32).at[0, :h2_dim].set(
        params["b_lin"].astype(jnp.float32))

    return {"wcat": wcat.astype(compute_dtype), "bias1": bias1,
            "w2": w2.astype(compute_dtype), "b2": b2,
            "dims": (g_dim, h1_dim, h2_dim, GP, H1P, H2P)}


# --------------------------- per-graph structure -------------------------------
def build_graph_tensors(edge_index, edge_type, edge_norm, n_nodes):
    """Edge list -> dense adjacency (irregular scatter; hoist/cache once per graph).
    adj_fused[dst, edge_type*n + src] layout matches the kernel's stacked XW blocks."""
    # TODO(synk): for large N, replace this O(R*N^2) dense form with in-kernel edge
    # aggregation (scalar-prefetched src/dst/type + pl.Element row gather) and tile
    # the dst-node axis (also set vmem_limit_bytes explicitly on v7x).
    src, dst = edge_index[0], edge_index[1]
    adj_fused = jnp.zeros((n_nodes, NUM_RELATIONS * n_nodes), jnp.float32
                          ).at[dst, edge_type * n_nodes + src].add(edge_norm.astype(jnp.float32))
    count = jnp.zeros((n_nodes,), jnp.float32).at[dst].add(1.0)
    inv_deg = (1.0 / jnp.maximum(count, 1.0)).reshape(n_nodes, 1)
    adj_all = jnp.zeros((n_nodes, n_nodes), jnp.float32).at[dst, src].add(1.0)
    return adj_fused, inv_deg, adj_all


# ------------------------------- wrappers --------------------------------------
def gcn_forward_batched(x_pad, adj_fused, inv_deg, adj_all, packed):
    """x_pad: [B, NP, GP] (compute dtype); adjacency tensors in f32. Returns [B, NP, H2P] f32."""
    _, _, _, GP, H1P, H2P = packed["dims"]
    B, NP, _ = x_pad.shape
    assert NP % 8 == 0, "pad node count to a multiple of 8 (sublanes)"
    R = NUM_RELATIONS
    wcat, bias1, w2, b2 = packed["wcat"], packed["bias1"], packed["w2"], packed["b2"]

    return pl.pallas_call(
        gcn_kernel,
        out_shape=jax.ShapeDtypeStruct((B, NP, H2P), jnp.float32),
        grid=(B,),
        in_specs=[
            pl.BlockSpec((1, NP, GP), lambda b: (b, 0, 0)),        # x            (per graph)
            pl.BlockSpec((1, NP, R * NP), lambda b: (b, 0, 0)),    # adj_fused    (per graph)
            pl.BlockSpec((1, NP, 1), lambda b: (b, 0, 0)),         # inv_deg      (per graph)
            pl.BlockSpec((1, NP, NP), lambda b: (b, 0, 0)),        # adj_all      (per graph)
            pl.BlockSpec(wcat.shape, lambda b: (0, 0)),            # wcat   (resident, shared)
            pl.BlockSpec(bias1.shape, lambda b: (0, 0)),           # bias1
            pl.BlockSpec(w2.shape, lambda b: (0, 0)),              # w2
            pl.BlockSpec(b2.shape, lambda b: (0, 0)),              # b2
        ],
        out_specs=pl.BlockSpec((1, NP, H2P), lambda b: (b, 0, 0)),
        compiler_params=pltpu.CompilerParams(
            dimension_semantics=("parallel",)),                    # megacore on v7x
    )(x_pad, adj_fused, inv_deg, adj_all, wcat, bias1, w2, b2)


def gcn_forward(node_features, edge_index, edge_type, edge_norm, params,
                compute_dtype=jnp.float32):
    """Single-graph forward matching the PyTorch module's signature."""
    n, g_dim = node_features.shape
    h1_dim = params["root"].shape[1]
    h2_dim = params["w_lin"].shape[1]
    packed = pack_gcn_params(params, g_dim, h1_dim, h2_dim, compute_dtype)
    GP = packed["dims"][3]
    np_ = _rup(n, 8)
    adj_f, inv_d, adj_a = build_graph_tensors(edge_index, edge_type, edge_norm, np_)
    x = jnp.zeros((1, np_, GP), compute_dtype).at[0, :n, :g_dim].set(
        node_features.astype(compute_dtype))
    out = gcn_forward_batched(x, adj_f[None], inv_d[None], adj_a[None], packed)
    return out[0, :n, :h2_dim]


# --------------------------- pure-JAX reference -------------------------------
def gcn_reference(node_features, edge_index, edge_type, edge_norm, params):
    n = node_features.shape[0]
    src, dst = edge_index[0], edge_index[1]
    w_rel = jnp.einsum("rb,bgh->rgh", params["att"], params["basis"])
    msg = jnp.einsum("eg,egh->eh", node_features[src], w_rel[edge_type]) * edge_norm[:, None]
    summ = jnp.zeros((n, msg.shape[1]), jnp.float32).at[dst].add(msg)
    cnt = jnp.zeros((n,), jnp.float32).at[dst].add(1.0)
    aggr = summ / jnp.maximum(cnt, 1.0)[:, None]
    h1 = aggr + node_features @ params["root"] + params["bias1"][None, :]
    msg2 = h1[src] @ params["w_neigh"]
    aggr2 = jnp.zeros((n, msg2.shape[1]), jnp.float32).at[dst].add(msg2)
    return aggr2 + h1 @ params["w_lin"] + params["b_lin"][None, :]


# ---------------------------------- main --------------------------------------
if __name__ == "__main__":
    g_dim, h1_dim, h2_dim = 32, 32, 32
    n_nodes, n_edges, n_graphs = 16, 40, 4

    key = jax.random.PRNGKey(0)
    kp, kg = jax.random.split(key)
    ks = jax.random.split(kp, 7)
    s = 0.1
    params = {
        "basis":   jax.random.normal(ks[0], (NUM_BASES, g_dim, h1_dim), jnp.float32) * s,
        "att":     jax.random.normal(ks[1], (NUM_RELATIONS, NUM_BASES), jnp.float32) * s,
        "root":    jax.random.normal(ks[2], (g_dim, h1_dim), jnp.float32) * s,
        "bias1":   jax.random.normal(ks[3], (h1_dim,), jnp.float32) * s,
        "w_neigh": jax.random.normal(ks[4], (h1_dim, h2_dim), jnp.float32) * s,
        "w_lin":   jax.random.normal(ks[5], (h1_dim, h2_dim), jnp.float32) * s,   # = lin.weight.T
        "b_lin":   jax.random.normal(ks[6], (h2_dim,), jnp.float32) * s,
    }

    # ---- build a batch of independent dialogue graphs ----
    gk = jax.random.split(kg, n_graphs)
    feats, eidx, etype, enorm = [], [], [], []
    for i in range(n_graphs):
        k0, k1, k2, k3, k4 = jax.random.split(gk[i], 5)
        feats.append(jax.random.normal(k0, (n_nodes, g_dim), jnp.float32))
        src = jax.random.randint(k1, (n_edges,), 0, n_nodes, dtype=jnp.int32)
        dst = jax.random.randint(k2, (n_edges,), 0, n_nodes, dtype=jnp.int32)
        eidx.append(jnp.stack([src, dst]))
        etype.append(jax.random.randint(k3, (n_edges,), 0, NUM_RELATIONS, dtype=jnp.int32))
        enorm.append(jax.random.uniform(k4, (n_edges,), jnp.float32))

    graph_t = [build_graph_tensors(eidx[i], etype[i], enorm[i], n_nodes)
               for i in range(n_graphs)]
    adj_f = jnp.stack([t[0] for t in graph_t])
    inv_d = jnp.stack([t[1] for t in graph_t])
    adj_a = jnp.stack([t[2] for t in graph_t])

    # ---- f32 batched path (grid over graphs, lane-dense 128-padded features) ----
    packed = pack_gcn_params(params, g_dim, h1_dim, h2_dim, compute_dtype=jnp.float32)
    GP = packed["dims"][3]
    x_pad = jnp.zeros((n_graphs, n_nodes, GP), jnp.float32
                      ).at[:, :, :g_dim].set(jnp.stack(feats))
    out = jax.block_until_ready(gcn_forward_batched(x_pad, adj_f, inv_d, adj_a, packed))
    out = out[:, :, :h2_dim]
    assert out.shape == (n_graphs, n_nodes, h2_dim)
    for i in range(n_graphs):
        ref = gcn_reference(feats[i], eidx[i], etype[i], enorm[i], params)
        assert jnp.allclose(out[i], ref, atol=1e-4, rtol=1e-4), f"graph {i}: f32 mismatch"

    # ---- bf16 weight/activation matmuls (f32 accumulation, f32 adjacency) ----
    packed_bf16 = pack_gcn_params(params, g_dim, h1_dim, h2_dim, compute_dtype=jnp.bfloat16)
    out_bf = jax.block_until_ready(
        gcn_forward_batched(x_pad.astype(jnp.bfloat16), adj_f, inv_d, adj_a, packed_bf16))
    out_bf = out_bf[:, :, :h2_dim]
    for i in range(n_graphs):
        ref = gcn_reference(feats[i], eidx[i], etype[i], enorm[i], params)
        assert jnp.allclose(out_bf[i], ref, atol=1e-1, rtol=1e-1), f"graph {i}: bf16 mismatch"

    # ---- single-graph wrapper matching the PyTorch module's forward signature ----
    out1 = jax.block_until_ready(gcn_forward(feats[0], eidx[0], etype[0], enorm[0], params))
    ref0 = gcn_reference(feats[0], eidx[0], etype[0], enorm[0], params)
    assert jnp.allclose(out1, ref0, atol=1e-4, rtol=1e-4), "single-graph mismatch"

    print("KERNEL_OK")
</pallas_src>

<mosaic_0001>
module attributes {stable_mosaic.version = 11 : i64} {
  func.func @gcn_kernel(%arg0: i32, %arg1: memref<1x16x128xf32, #tpu.memory_space<vmem>>, %arg2: memref<1x16x128xf32, #tpu.memory_space<vmem>>, %arg3: memref<1x16x1xf32, #tpu.memory_space<vmem>>, %arg4: memref<1x16x16xf32, #tpu.memory_space<vmem>>, %arg5: memref<128x1152xf32, #tpu.memory_space<vmem>>, %arg6: memref<1x128xf32, #tpu.memory_space<vmem>>, %arg7: memref<256x128xf32, #tpu.memory_space<vmem>>, %arg8: memref<1x128xf32, #tpu.memory_space<vmem>>, %arg9: memref<1x16x128xf32, #tpu.memory_space<vmem>>) attributes {dimension_semantics = [#tpu.dimension_semantics<parallel>], iteration_bounds = array<i64: 4>, scalar_prefetch = 0 : i64, scratch_operands = 0 : i64, tpu.core_type = #tpu.core_type<tc>, window_params = [{transform_indices = @transform_0, window_bounds = array<i64: 1, 16, 128>}, {transform_indices = @transform_1, window_bounds = array<i64: 1, 16, 128>}, {transform_indices = @transform_2, window_bounds = array<i64: 1, 16, 1>}, {transform_indices = @transform_3, window_bounds = array<i64: 1, 16, 16>}, {pipeline_mode = #tpu.pipeline_mode<synchronous>, transform_indices = @transform_4, window_bounds = array<i64: 128, 1152>}, {pipeline_mode = #tpu.pipeline_mode<synchronous>, transform_indices = @transform_5, window_bounds = array<i64: 1, 128>}, {pipeline_mode = #tpu.pipeline_mode<synchronous>, transform_indices = @transform_6, window_bounds = array<i64: 256, 128>}, {pipeline_mode = #tpu.pipeline_mode<synchronous>, transform_indices = @transform_7, window_bounds = array<i64: 1, 128>}, {transform_indices = @transform_8, window_bounds = array<i64: 1, 16, 128>}]} {
    %c0 = arith.constant 0 : index
    %c0_0 = arith.constant 0 : index
    %c0_1 = arith.constant 0 : index
    %0 = vector.load %arg1[%c0, %c0_0, %c0_1] : memref<1x16x128xf32, #tpu.memory_space<vmem>>, vector<1x16x128xf32>
    %1 = vector.shape_cast %0 : vector<1x16x128xf32> to vector<16x128xf32>
    %c0_2 = arith.constant 0 : index
    %c0_3 = arith.constant 0 : index
    %2 = vector.load %arg5[%c0_2, %c0_3] : memref<128x1152xf32, #tpu.memory_space<vmem>>, vector<128x1152xf32>
    %cst = arith.constant dense<0.000000e+00> : vector<16x1152xf32>
    %3 = tpu.matmul %1, %2, %cst {dimension_numbers = #tpu.dot_dimension_numbers<[1], [0], [0], [1], [0, 0, 1, 1], [], []>} : vector<16x128xf32>, vector<128x1152xf32>, vector<16x1152xf32> -> vector<16x1152xf32>
    %4 = vector.extract_strided_slice %3 {offsets = [0, 0], sizes = [16, 128], strides = [1, 1]} : vector<16x1152xf32> to vector<16x128xf32>
    %5 = vector.extract_strided_slice %3 {offsets = [0, 128], sizes = [16, 128], strides = [1, 1]} : vector<16x1152xf32> to vector<16x128xf32>
    %6 = vector.extract_strided_slice %3 {offsets = [0, 256], sizes = [16, 128], strides = [1, 1]} : vector<16x1152xf32> to vector<16x128xf32>
    %7 = vector.extract_strided_slice %3 {offsets = [0, 384], sizes = [16, 128], strides = [1, 1]} : vector<16x1152xf32> to vector<16x128xf32>
    %8 = vector.extract_strided_slice %3 {offsets = [0, 512], sizes = [16, 128], strides = [1, 1]} : vector<16x1152xf32> to vector<16x128xf32>
    %9 = vector.extract_strided_slice %3 {offsets = [0, 640], sizes = [16, 128], strides = [1, 1]} : vector<16x1152xf32> to vector<16x128xf32>
    %10 = vector.extract_strided_slice %3 {offsets = [0, 768], sizes = [16, 128], strides = [1, 1]} : vector<16x1152xf32> to vector<16x128xf32>
    %11 = vector.extract_strided_slice %3 {offsets = [0, 896], sizes = [16, 128], strides = [1, 1]} : vector<16x1152xf32> to vector<16x128xf32>
    %12 = tpu.concatenate %4, %5, %6, %7, %8, %9, %10, %11 in 0 : vector<16x128xf32>, vector<16x128xf32>, vector<16x128xf32>, vector<16x128xf32>, vector<16x128xf32>, vector<16x128xf32>, vector<16x128xf32>, vector<16x128xf32> -> vector<128x128xf32>
    %c0_4 = arith.constant 0 : index
    %c0_5 = arith.constant 0 : index
    %c0_6 = arith.constant 0 : index
    %13 = vector.load %arg2[%c0_4, %c0_5, %c0_6] : memref<1x16x128xf32, #tpu.memory_space<vmem>>, vector<1x16x128xf32>
    %14 = vector.shape_cast %13 : vector<1x16x128xf32> to vector<16x128xf32>
    %cst_7 = arith.constant dense<0.000000e+00> : vector<16x128xf32>
    %15 = tpu.matmul %14, %12, %cst_7 {dimension_numbers = #tpu.dot_dimension_numbers<[1], [0], [0], [1], [0, 0, 1, 1], [], []>} : vector<16x128xf32>, vector<128x128xf32>, vector<16x128xf32> -> vector<16x128xf32>
    %c0_8 = arith.constant 0 : index
    %c0_9 = arith.constant 0 : index
    %c0_10 = arith.constant 0 : index
    %16 = vector.load %arg3[%c0_8, %c0_9, %c0_10] : memref<1x16x1xf32, #tpu.memory_space<vmem>>, vector<1x16x1xf32>
    %17 = vector.shape_cast %16 : vector<1x16x1xf32> to vector<16x1xf32>
    %18 = vector.broadcast %17 : vector<16x1xf32> to vector<16x128xf32>
    %19 = arith.mulf %15, %18 : vector<16x128xf32>
    %20 = vector.extract_strided_slice %3 {offsets = [0, 1024], sizes = [16, 128], strides = [1, 1]} : vector<16x1152xf32> to vector<16x128xf32>
    %21 = arith.addf %19, %20 : vector<16x128xf32>
    %c0_11 = arith.constant 0 : index
    %c0_12 = arith.constant 0 : index
    %22 = vector.load %arg6[%c0_11, %c0_12] : memref<1x128xf32, #tpu.memory_space<vmem>>, vector<1x128xf32>
    %23 = vector.broadcast %22 : vector<1x128xf32> to vector<16x128xf32>
    %24 = arith.addf %21, %23 : vector<16x128xf32>
    %c0_13 = arith.constant 0 : index
    %c0_14 = arith.constant 0 : index
    %c0_15 = arith.constant 0 : index
    %25 = vector.load %arg4[%c0_13, %c0_14, %c0_15] : memref<1x16x16xf32, #tpu.memory_space<vmem>>, vector<1x16x16xf32>
    %26 = vector.shape_cast %25 : vector<1x16x16xf32> to vector<16x16xf32>
    %cst_16 = arith.constant dense<0.000000e+00> : vector<16x128xf32>
    %27 = tpu.matmul %26, %24, %cst_16 {dimension_numbers = #tpu.dot_dimension_numbers<[1], [0], [0], [1], [0, 0, 1, 1], [], []>} : vector<16x16xf32>, vector<16x128xf32>, vector<16x128xf32> -> vector<16x128xf32>
    %28 = tpu.concatenate %27, %24 in 1 : vector<16x128xf32>, vector<16x128xf32> -> vector<16x256xf32>
    %c0_17 = arith.constant 0 : index
    %c0_18 = arith.constant 0 : index
    %29 = vector.load %arg7[%c0_17, %c0_18] : memref<256x128xf32, #tpu.memory_space<vmem>>, vector<256x128xf32>
    %cst_19 = arith.constant dense<0.000000e+00> : vector<16x128xf32>
    %30 = tpu.matmul %28, %29, %cst_19 {dimension_numbers = #tpu.dot_dimension_numbers<[1], [0], [0], [1], [0, 0, 1, 1], [], []>} : vector<16x256xf32>, vector<256x128xf32>, vector<16x128xf32> -> vector<16x128xf32>
    %c0_20 = arith.constant 0 : index
    %c0_21 = arith.constant 0 : index
    %31 = vector.load %arg8[%c0_20, %c0_21] : memref<1x128xf32, #tpu.memory_space<vmem>>, vector<1x128xf32>
    %32 = vector.broadcast %31 : vector<1x128xf32> to vector<16x128xf32>
    %33 = arith.addf %30, %32 : vector<16x128xf32>
    %c0_22 = arith.constant 0 : index
    %c0_23 = arith.constant 0 : index
    %c0_24 = arith.constant 0 : index
    %34 = vector.load %arg9[%c0_22, %c0_23, %c0_24] : memref<1x16x128xf32, #tpu.memory_space<vmem>>, vector<1x16x128xf32>
    %35 = vector.shape_cast %34 : vector<1x16x128xf32> to vector<16x128xf32>
    %36 = vector.shape_cast %33 : vector<16x128xf32> to vector<1x16x128xf32>
    tpu.vector_store %arg9[%c0_22, %c0_23, %c0_24], %36 {strides = array<i32>} : memref<1x16x128xf32, #tpu.memory_space<vmem>>, vector<1x16x128xf32>,
    return
  }
  func.func @transform_0(%arg0: i32) -> (i32, i32, i32) {
    %c0_i32 = arith.constant 0 : i32
    %c0_i32_0 = arith.constant 0 : i32
    %c0_i32_1 = arith.constant 0 : i32
    return %arg0, %c0_i32, %c0_i32_0 : i32, i32, i32
  }
  func.func @transform_1(%arg0: i32) -> (i32, i32, i32) {
    %c0_i32 = arith.constant 0 : i32
    %c0_i32_0 = arith.constant 0 : i32
    %c0_i32_1 = arith.constant 0 : i32
    return %arg0, %c0_i32, %c0_i32_0 : i32, i32, i32
  }
  func.func @transform_2(%arg0: i32) -> (i32, i32, i32) {
    %c0_i32 = arith.constant 0 : i32
    %c0_i32_0 = arith.constant 0 : i32
    %c0_i32_1 = arith.constant 0 : i32
    return %arg0, %c0_i32, %c0_i32_0 : i32, i32, i32
  }
  func.func @transform_3(%arg0: i32) -> (i32, i32, i32) {
    %c0_i32 = arith.constant 0 : i32
    %c0_i32_0 = arith.constant 0 : i32
    %c0_i32_1 = arith.constant 0 : i32
    return %arg0, %c0_i32, %c0_i32_0 : i32, i32, i32
  }
  func.func @transform_4(%arg0: i32) -> (i32, i32) {
    %c0_i32 = arith.constant 0 : i32
    %c0_i32_0 = arith.constant 0 : i32
    %c0_i32_1 = arith.constant 0 : i32
    return %c0_i32, %c0_i32_0 : i32, i32
  }
  func.func @transform_5(%arg0: i32) -> (i32, i32) {
    %c0_i32 = arith.constant 0 : i32
    %c0_i32_0 = arith.constant 0 : i32
    %c0_i32_1 = arith.constant 0 : i32
    return %c0_i32, %c0_i32_0 : i32, i32
  }
  func.func @transform_6(%arg0: i32) -> (i32, i32) {
    %c0_i32 = arith.constant 0 : i32
    %c0_i32_0 = arith.constant 0 : i32
    %c0_i32_1 = arith.constant 0 : i32
    return %c0_i32, %c0_i32_0 : i32, i32
  }
  func.func @transform_7(%arg0: i32) -> (i32, i32) {
    %c0_i32 = arith.constant 0 : i32
    %c0_i32_0 = arith.constant 0 : i32
    %c0_i32_1 = arith.constant 0 : i32
    return %c0_i32, %c0_i32_0 : i32, i32
  }
  func.func @transform_8(%arg0: i32) -> (i32, i32, i32) {
    %c0_i32 = arith.constant 0 : i32
    %c0_i32_0 = arith.constant 0 : i32
    %c0_i32_1 = arith.constant 0 : i32
    return %arg0, %c0_i32, %c0_i32_0 : i32, i32, i32
  }
}

</mosaic_0001>

<llo_original>
// kernel: tpu_custom_call.1
$region0: #{tpu_custom_call.1}
  #allocation0 [shape = 'u32[]', space=smem, size = 0x4, offset = 0x4, fixed_abs, tag = 'smem constant byte address 0x4 - core index']
  #allocation1 [shape = 'u32[72,128]{1,0:T(1,128)}', space=vmem, size = 0x9000, scoped, tag = 'internal scratch']
  %s0 = inlined_call_operand.vmem [shape: f32[4,16,128], index: 0, kind: input, shape index: {}]
  %s1 = inlined_call_operand.hbm [shape: f32[4,16,128], index: 1, kind: input, shape index: {}]
  %s2 = inlined_call_operand.vmem [shape: f32[4,16,1], index: 2, kind: input, shape index: {}]
  %s3 = inlined_call_operand.hbm [shape: f32[4,16,16], index: 3, kind: input, shape index: {}]
  %s4 = inlined_call_operand.hbm [shape: f32[128,1152], index: 4, kind: input, shape index: {}]
  %s5 = inlined_call_operand.vmem [shape: f32[1,128], index: 5, kind: input, shape index: {}]
  %s6 = inlined_call_operand.hbm [shape: f32[256,128], index: 6, kind: input, shape index: {}]
  %s7 = inlined_call_operand.vmem [shape: f32[1,128], index: 7, kind: input, shape index: {}]
  %s8 = inlined_call_operand.hbm [shape: f32[4,16,128], index: 8, kind: output, shape index: {}]
  %s9 = sld [smem:[#allocation0]]
  $region81: #{tpu_custom_call.1} parent=0
    _
  %s11 = ssub.s32 1, %s9
  %s12 = scalar_select 0, %s11, %s9
  $region1: #{tpu_custom_call.1} parent=0
    #allocation2 [shape = 'u8[16384]{0}', space=vmem, size = 0x4000, scoped, tag = 'input window, operand 1']
    #allocation3 [shape = 's32[2]{0}', space=sflag, size = 0x8, scoped, tag = 'scoped memory for tpu_custom_call.1']
    #allocation4 [shape = 's32[2]{0}', space=sflag, size = 0x8, scoped, tag = 'scoped memory for tpu_custom_call.1']
    #allocation5 [shape = 'u8[16384]{0}', space=vmem, size = 0x4000, scoped, tag = 'input window, operand 3']
    #allocation6 [shape = 's32[2]{0}', space=sflag, size = 0x8, scoped, tag = 'scoped memory for tpu_custom_call.1']
    #allocation7 [shape = 'u8[589824]{0}', space=vmem, size = 0x90000, scoped, tag = 'input window, operand 4, single buffered']
    #allocation8 [shape = 'u8[131072]{0}', space=vmem, size = 0x20000, scoped, tag = 'input window, operand 6, single buffered']
    #allocation9 [shape = 's32[1]{0}', space=sflag, size = 0x4, scoped, tag = 'scoped memory for tpu_custom_call.1']
    #allocation10 [shape = 'u8[16384]{0}', space=vmem, size = 0x4000, scoped, tag = 'output window, operand 0']
    %13 = vsyncpa [#allocation3], 0
    %s14 = scalar_lea.sflag [#allocation3], 1
    %15 = vsyncpa %s14, 0
    %16 = vsyncpa [#allocation6], 0
    %s17 = scalar_lea.sflag [#allocation6], 1
    %18 = vsyncpa %s17, 0
    %19 = vsyncpa [#allocation9], 0
    %20 = vsyncpa [#allocation4], 0
    %s21 = scalar_lea.sflag [#allocation4], 1
    %22 = vsyncpa %s21, 0
    loop: start=0, step=1, limit=6
    $region2: #{tpu_custom_call.1} parent=1 // loop_pre_header
      _
    $region3: #{tpu_custom_call.1} parent=1 // loop_header
      %s24 = sphi 0, %s28
      %p25 = scmp.ge.s32.totalorder %s24, 6
      %s34 = sphi 0, %s36
      %s37 = sphi 0, %s34
      %s38 = sphi 0, %s37
      %s54 = sphi 0, %s38
      %s60 = sphi 0, %s62
      %s63 = sphi 0, %s60
      %s64 = sphi 0, %s63
      %s80 = sphi 0, %s64
      %s86 = sphi 0, %s88
      %s89 = sphi 0, %s86
      %s90 = sphi 0, %s89
      %s106 = sphi 0, %s90
      %s112 = sphi 0, %s114
      %s115 = sphi 0, %s112
      %s116 = sphi 0, %s115
      %s132 = sphi 0, %s116
      %s136 = sphi 0, %s136
      %s138 = sphi 0, %s136
      %s139 = sphi 0, %s138
      %s153 = sphi 0, %s139
      %s157 = sphi 0, %s157
      %s159 = sphi 0, %s157
      %s160 = sphi 0, %s159
      %s174 = sphi 0, %s160
      %s178 = sphi 0, %s178
      %s180 = sphi 0, %s178
      %s181 = sphi 0, %s180
      %s195 = sphi 0, %s181
      %s199 = sphi 0, %s199
      %s201 = sphi 0, %s199
      %s202 = sphi 0, %s201
      %s216 = sphi 0, %s202
      %s222 = sphi 0, %s224
      %s225 = sphi 0, %s222
      %s226 = sphi 0, %s225
      %s242 = sphi 0, %s226
    $region4: #{tpu_custom_call.1} parent=1 // loop_header_branch
      %27 = sbr.rel (%p25) target = $region8
    $region5: #{tpu_custom_call.1} parent=1 // loop_body
      %s29 = ssub.s32 %s24, 1
      %s30 = ssub.s32 %s24, 2
      %s31 = sadd.s32 %s24, 1
      %s32 = ssub.s32 %s24, %s31
      %p33 = scmp.eq.s32.totalorder %s32, 0
      %s35 = sadd.s32 %s34, 1
      %s36 = scalar_select %p33, %s34, %s35
      %p39 = pneg %p33
      %p40 = scmp.eq.s32.totalorder %s24, 3
      %p41 = por %p39, %p40
      %p42 = scmp.ne.s32.totalorder %s34, %s37
      %p43 = scmp.eq.s32.totalorder %s24, 0
      %p44 = por %p42, %p43
      %p45 = scmp.ne.s32.totalorder %s34, %s37
      %p46 = scmp.eq.s32.totalorder %s29, 3
      %p47 = por %p45, %p46
      %p48 = scmp.ne.s32.totalorder %s37, %s38
      %p49 = scmp.eq.s32.totalorder %s29, 0
      %p50 = por %p48, %p49
      %p51 = scmp.ne.s32.totalorder %s37, %s38
      %p52 = scmp.eq.s32.totalorder %s30, 3
      %p53 = por %p51, %p52
      %p55 = scmp.ne.s32.totalorder %s38, %s54
      %p56 = scmp.eq.s32.totalorder %s30, 0
      %p57 = por %p55, %p56
      %s58 = ssub.s32 %s24, %s31
      %p59 = scmp.eq.s32.totalorder %s58, 0
      %s61 = sadd.s32 %s60, 1
      %s62 = scalar_select %p59, %s60, %s61
      %p65 = pneg %p59
      %p66 = scmp.eq.s32.totalorder %s24, 3
      %p67 = por %p65, %p66
      %p68 = scmp.ne.s32.totalorder %s60, %s63
      %p69 = scmp.eq.s32.totalorder %s24, 0
      %p70 = por %p68, %p69
      %p71 = scmp.ne.s32.totalorder %s60, %s63
      %p72 = scmp.eq.s32.totalorder %s29, 3
      %p73 = por %p71, %p72
      %p74 = scmp.ne.s32.totalorder %s63, %s64
      %p75 = scmp.eq.s32.totalorder %s29, 0
      %p76 = por %p74, %p75
      %p77 = scmp.ne.s32.totalorder %s63, %s64
      %p78 = scmp.eq.s32.totalorder %s30, 3
      %p79 = por %p77, %p78
      %p81 = scmp.ne.s32.totalorder %s64, %s80
      %p82 = scmp.eq.s32.totalorder %s30, 0
      %p83 = por %p81, %p82
      %s84 = ssub.s32 %s24, %s31
      %p85 = scmp.eq.s32.totalorder %s84, 0
      %s87 = sadd.s32 %s86, 1
      %s88 = scalar_select %p85, %s86, %s87
      %p91 = pneg %p85
      %p92 = scmp.eq.s32.totalorder %s24, 3
      %p93 = por %p91, %p92
      %p94 = scmp.ne.s32.totalorder %s86, %s89
      %p95 = scmp.eq.s32.totalorder %s24, 0
      %p96 = por %p94, %p95
      %p97 = scmp.ne.s32.totalorder %s86, %s89
      %p98 = scmp.eq.s32.totalorder %s29, 3
      %p99 = por %p97, %p98
      %p100 = scmp.ne.s32.totalorder %s89, %s90
      %p101 = scmp.eq.s32.totalorder %s29, 0
      %p102 = por %p100, %p101
      %p103 = scmp.ne.s32.totalorder %s89, %s90
      %p104 = scmp.eq.s32.totalorder %s30, 3
      %p105 = por %p103, %p104
      %p107 = scmp.ne.s32.totalorder %s90, %s106
      %p108 = scmp.eq.s32.totalorder %s30, 0
      %p109 = por %p107, %p108
      %s110 = ssub.s32 %s24, %s31
      %p111 = scmp.eq.s32.totalorder %s110, 0
      %s113 = sadd.s32 %s112, 1
      %s114 = scalar_select %p111, %s112, %s113
      %p117 = pneg %p111
      %p118 = scmp.eq.s32.totalorder %s24, 3
      %p119 = por %p117, %p118
      %p120 = scmp.ne.s32.totalorder %s112, %s115
      %p121 = scmp.eq.s32.totalorder %s24, 0
      %p122 = por %p120, %p121
      %p123 = scmp.ne.s32.totalorder %s112, %s115
      %p124 = scmp.eq.s32.totalorder %s29, 3
      %p125 = por %p123, %p124
      %p126 = scmp.ne.s32.totalorder %s115, %s116
      %p127 = scmp.eq.s32.totalorder %s29, 0
      %p128 = por %p126, %p127
      %p129 = scmp.ne.s32.totalorder %s115, %s116
      %p130 = scmp.eq.s32.totalorder %s30, 3
      %p131 = por %p129, %p130
      %p133 = scmp.ne.s32.totalorder %s116, %s132
      %p134 = scmp.eq.s32.totalorder %s30, 0
      %p135 = por %p133, %p134
      %s137 = sadd.s32 %s136, 1
      %p140 = scmp.eq.s32.totalorder %s24, 3
      %p141 = scmp.ne.s32.totalorder %s136, %s138
      %p142 = scmp.eq.s32.totalorder %s24, 0
      %p143 = por %p141, %p142
      %p144 = scmp.ne.s32.totalorder %s136, %s138
      %p145 = scmp.eq.s32.totalorder %s29, 3
      %p146 = por %p144, %p145
      %p147 = scmp.ne.s32.totalorder %s138, %s139
      %p148 = scmp.eq.s32.totalorder %s29, 0
      %p149 = por %p147, %p148
      %p150 = scmp.ne.s32.totalorder %s138, %s139
      %p151 = scmp.eq.s32.totalorder %s30, 3
      %p152 = por %p150, %p151
      %p154 = scmp.ne.s32.totalorder %s139, %s153
      %p155 = scmp.eq.s32.totalorder %s30, 0
      %p156 = por %p154, %p155
      %s158 = sadd.s32 %s157, 1
      %p161 = scmp.eq.s32.totalorder %s24, 3
      %p162 = scmp.ne.s32.totalorder %s157, %s159
      %p163 = scmp.eq.s32.totalorder %s24, 0
      %p164 = por %p162, %p163
      %p165 = scmp.ne.s32.totalorder %s157, %s159
      %p166 = scmp.eq.s32.totalorder %s29, 3
      %p167 = por %p165, %p166
      %p168 = scmp.ne.s32.totalorder %s159, %s160
      %p169 = scmp.eq.s32.totalorder %s29, 0
      %p170 = por %p168, %p169
      %p171 = scmp.ne.s32.totalorder %s159, %s160
      %p172 = scmp.eq.s32.totalorder %s30, 3
      %p173 = por %p171, %p172
      %p175 = scmp.ne.s32.totalorder %s160, %s174
      %p176 = scmp.eq.s32.totalorder %s30, 0
      %p177 = por %p175, %p176
      %s179 = sadd.s32 %s178, 1
      %p182 = scmp.eq.s32.totalorder %s24, 3
      %p183 = scmp.ne.s32.totalorder %s178, %s180
      %p184 = scmp.eq.s32.totalorder %s24, 0
      %p185 = por %p183, %p184
      %p186 = scmp.ne.s32.totalorder %s178, %s180
      %p187 = scmp.eq.s32.totalorder %s29, 3
      %p188 = por %p186, %p187
      %p189 = scmp.ne.s32.totalorder %s180, %s181
      %p190 = scmp.eq.s32.totalorder %s29, 0
      %p191 = por %p189, %p190
      %p192 = scmp.ne.s32.totalorder %s180, %s181
      %p193 = scmp.eq.s32.totalorder %s30, 3
      %p194 = por %p192, %p193
      %p196 = scmp.ne.s32.totalorder %s181, %s195
      %p197 = scmp.eq.s32.totalorder %s30, 0
      %p198 = por %p196, %p197
      %s200 = sadd.s32 %s199, 1
      %p203 = scmp.eq.s32.totalorder %s24, 3
      %p204 = scmp.ne.s32.totalorder %s199, %s201
      %p205 = scmp.eq.s32.totalorder %s24, 0
      %p206 = por %p204, %p205
      %p207 = scmp.ne.s32.totalorder %s199, %s201
      %p208 = scmp.eq.s32.totalorder %s29, 3
      %p209 = por %p207, %p208
      %p210 = scmp.ne.s32.totalorder %s201, %s202
      %p211 = scmp.eq.s32.totalorder %s29, 0
      %p212 = por %p210, %p211
      %p213 = scmp.ne.s32.totalorder %s201, %s202
      %p214 = scmp.eq.s32.totalorder %s30, 3
      %p215 = por %p213, %p214
      %p217 = scmp.ne.s32.totalorder %s202, %s216
      %p218 = scmp.eq.s32.totalorder %s30, 0
      %p219 = por %p217, %p218
      %s220 = ssub.s32 %s24, %s31
      %p221 = scmp.eq.s32.totalorder %s220, 0
      %s223 = sadd.s32 %s222, 1
      %s224 = scalar_select %p221, %s222, %s223
      %p227 = pneg %p221
      %p228 = scmp.eq.s32.totalorder %s24, 3
      %p229 = por %p227, %p228
      %p230 = scmp.ne.s32.totalorder %s222, %s225
      %p231 = scmp.eq.s32.totalorder %s24, 0
      %p232 = por %p230, %p231
      %p233 = scmp.ne.s32.totalorder %s222, %s225
      %p234 = scmp.eq.s32.totalorder %s29, 3
      %p235 = por %p233, %p234
      %p236 = scmp.ne.s32.totalorder %s225, %s226
      %p237 = scmp.eq.s32.totalorder %s29, 0
      %p238 = por %p236, %p237
      %p239 = scmp.ne.s32.totalorder %s225, %s226
      %p240 = scmp.eq.s32.totalorder %s30, 3
      %p241 = por %p239, %p240
      %p243 = scmp.ne.s32.totalorder %s226, %s242
      %p244 = scmp.eq.s32.totalorder %s30, 0
      %p245 = por %p243, %p244
      %p246 = scmp.le.s32.totalorder 1, %s24
      %p247 = scmp.lt.s32.totalorder %s24, 5
      %p248 = pnand %p246, %p247
      %p249 = pneg %p248
      // Predicated region
      $region9: #{tpu_custom_call.1} parent=5 // pred_check
        _
      $region10: #{tpu_custom_call.1} parent=5 // pred_check_branch
        %251 = sbr.rel (%p248) target = $region12
      $region11: #{tpu_custom_call.1} parent=5 // pred_region
        %s252 = ssub.s32 %s24, 1
        // Predicated region
        $region13: #{tpu_custom_call.1} parent=11 // pred_check
          %p253 = pneg %p149
        $region14: #{tpu_custom_call.1} parent=11 // pred_check_branch
          %255 = sbr.rel (%p253) target = $region16
        $region15: #{tpu_custom_call.1} parent=11 // pred_region
          %257 = vsyncadd [#allocation6], 0
          %s258 = sshll.u32 %s4, 4
          %s259 = int_to_ptr.hbm [resolvable:$true] %s258
          %s260 = sshll.u32 [#allocation7], 4
          %s261 = int_to_ptr.vmem [resolvable:$true] %s260
          %266 = dma.hbm_to_vmem [thread:$0]  %s259, 18432, %s261, [#allocation6], 1152, 1152, 72
        $region16: #{tpu_custom_call.1} parent=11 // pred_fallthru
          _
        // Predicated region
        $region17: #{tpu_custom_call.1} parent=11 // pred_check
          %p267 = pneg %p170
        $region18: #{tpu_custom_call.1} parent=11 // pred_check_branch
          %269 = sbr.rel (%p267) target = $region20
        $region19: #{tpu_custom_call.1} parent=11 // pred_region
          _
        $region20: #{tpu_custom_call.1} parent=11 // pred_fallthru
          _
        // Predicated region
        $region21: #{tpu_custom_call.1} parent=11 // pred_check
          %p270 = pneg %p191
        $region22: #{tpu_custom_call.1} parent=11 // pred_check_branch
          %272 = sbr.rel (%p270) target = $region24
        $region23: #{tpu_custom_call.1} parent=11 // pred_region
          %274 = vsyncadd [#allocation9], 0
          %s275 = sshll.u32 %s6, 4
          %s276 = int_to_ptr.hbm [resolvable:$true] %s275
          %s277 = sshll.u32 [#allocation8], 4
          %s278 = int_to_ptr.vmem [resolvable:$true] %s277
          %283 = dma.hbm_to_vmem [thread:$0]  %s276, 4096, %s278, [#allocation9], 128, 128, 8
        $region24: #{tpu_custom_call.1} parent=11 // pred_fallthru
          _
        // Predicated region
        $region25: #{tpu_custom_call.1} parent=11 // pred_check
          %p284 = pneg %p212
        $region26: #{tpu_custom_call.1} parent=11 // pred_check_branch
          %286 = sbr.rel (%p284) target = $region28
        $region27: #{tpu_custom_call.1} parent=11 // pred_region
          _
        $region28: #{tpu_custom_call.1} parent=11 // pred_fallthru
          _
      $region12: #{tpu_custom_call.1} parent=5 // pred_fallthru
        _
      %p287 = scmp.lt.s32.totalorder %s24, 4
      // Predicated region
      $region29: #{tpu_custom_call.1} parent=5 // pred_check
        %p288 = pneg %p287
      $region30: #{tpu_custom_call.1} parent=5 // pred_check_branch
        %290 = sbr.rel (%p288) target = $region32
      $region31: #{tpu_custom_call.1} parent=5 // pred_region
        // Predicated region
        $region33: #{tpu_custom_call.1} parent=31 // pred_check
          %p291 = pneg %p44
        $region34: #{tpu_custom_call.1} parent=31 // pred_check_branch
          %293 = sbr.rel (%p291) target = $region36
        $region35: #{tpu_custom_call.1} parent=31 // pred_region
          %p294 = scmp.lt.s32.totalorder %s24, 3
          %s295 = scalar_select %p294, %s24, 3
          %s296 = smul.addr %s295, 2
          %s297 = smul.addr %s296, 8
          %s298 = scalar_lea.vmem %s0, %s297
        $region36: #{tpu_custom_call.1} parent=31 // pred_fallthru
          _
        // Predicated region
        $region37: #{tpu_custom_call.1} parent=31 // pred_check
          %p299 = pneg %p70
        $region38: #{tpu_custom_call.1} parent=31 // pred_check_branch
          %301 = sbr.rel (%p299) target = $region40
        $region39: #{tpu_custom_call.1} parent=31 // pred_region
          %s302 = sand.u32 %s60, 1
          %s303 = scalar_lea.sflag [#allocation3], %s302
          %s304 = sand.u32 %s60, 1
          %s305 = smul.addr %s304, 16
          %s306 = scalar_lea.vmem [#allocation2], %s305
          %308 = vsyncadd %s303, 0
          %s309 = smul.addr %s24, 2
          %s310 = smul.addr %s309, 8
          %s311 = scalar_lea.hbm %s1, %s310
          %s312 = sshll.u32 %s311, 4
          %s313 = int_to_ptr.hbm [resolvable:$true] %s312
          %s314 = sshll.u32 %s306, 4
          %s315 = int_to_ptr.vmem [resolvable:$true] %s314
          %320 = dma.hbm_to_vmem [thread:$0]  %s313, 256, %s315, %s303, 128, 128, 8
        $region40: #{tpu_custom_call.1} parent=31 // pred_fallthru
          _
        // Predicated region
        $region41: #{tpu_custom_call.1} parent=31 // pred_check
          %p321 = pneg %p96
        $region42: #{tpu_custom_call.1} parent=31 // pred_check_branch
          %323 = sbr.rel (%p321) target = $region44
        $region43: #{tpu_custom_call.1} parent=31 // pred_region
          %p324 = scmp.lt.s32.totalorder %s24, 3
          %s325 = scalar_select %p324, %s24, 3
          %s326 = smul.addr %s325, 2
          %s327 = smul.addr %s326, 8
          %s328 = scalar_lea.vmem %s2, %s327
        $region44: #{tpu_custom_call.1} parent=31 // pred_fallthru
          _
        // Predicated region
        $region45: #{tpu_custom_call.1} parent=31 // pred_check
          %p329 = pneg %p122
        $region46: #{tpu_custom_call.1} parent=31 // pred_check_branch
          %331 = sbr.rel (%p329) target = $region48
        $region47: #{tpu_custom_call.1} parent=31 // pred_region
          %s332 = sand.u32 %s24, 1
          %s333 = scalar_lea.sflag [#allocation6], %s332
          %s334 = sand.u32 %s112, 1
          %s335 = smul.addr %s334, 16
          %s336 = scalar_lea.vmem [#allocation5], %s335
          %338 = vsyncadd %s333, 0
          %s339 = smul.addr %s24, 2
          %s340 = smul.addr %s339, 8
          %s341 = scalar_lea.hbm %s3, %s340
          %s342 = sshll.u32 %s341, 4
          %s343 = int_to_ptr.hbm [resolvable:$true] %s342
          %s344 = sshll.u32 %s336, 4
          %s345 = int_to_ptr.vmem [resolvable:$true] %s344
          %350 = dma.hbm_to_vmem [thread:$0]  %s343, 256, %s345, %s333, 128, 128, 8
        $region48: #{tpu_custom_call.1} parent=31 // pred_fallthru
          _
      $region32: #{tpu_custom_call.1} parent=5 // pred_fallthru
        _
      %p351 = scmp.le.s32.totalorder 1, %s24
      %p352 = scmp.lt.s32.totalorder %s24, 5
      %p353 = pnand %p351, %p352
      %p354 = pneg %p353
      // Predicated region
      $region49: #{tpu_custom_call.1} parent=5 // pred_check
        _
      $region50: #{tpu_custom_call.1} parent=5 // pred_check_branch
        %356 = sbr.rel (%p353) target = $region52
      $region51: #{tpu_custom_call.1} parent=5 // pred_region
        %s357 = ssub.s32 %s24, 1
        %s358 = sand.u32 %s63, 1
        %s359 = scalar_lea.sflag [#allocation3], %s358
        %s360 = sand.u32 %s63, 1
        %s361 = smul.addr %s360, 16
        %s362 = scalar_lea.vmem [#allocation2], %s361
        // Predicated region
        $region53: #{tpu_custom_call.1} parent=51 // pred_check
          %p363 = pneg %p76
        $region54: #{tpu_custom_call.1} parent=51 // pred_check_branch
          %365 = sbr.rel (%p363) target = $region56
        $region55: #{tpu_custom_call.1} parent=51 // pred_region
          %367 = dma.done %s359, 256
        $region56: #{tpu_custom_call.1} parent=51 // pred_fallthru
          _
        %s368 = sand.u32 %s29, 1
        %s369 = scalar_lea.sflag [#allocation6], %s368
        %s370 = sand.u32 %s115, 1
        %s371 = smul.addr %s370, 16
        %s372 = scalar_lea.vmem [#allocation5], %s371
        // Predicated region
        $region57: #{tpu_custom_call.1} parent=51 // pred_check
          %p373 = pneg %p128
        $region58: #{tpu_custom_call.1} parent=51 // pred_check_branch
          %375 = sbr.rel (%p373) target = $region60
        $region59: #{tpu_custom_call.1} parent=51 // pred_region
          %377 = dma.done %s369, 256
        $region60: #{tpu_custom_call.1} parent=51 // pred_fallthru
          _
        // Predicated region
        $region61: #{tpu_custom_call.1} parent=51 // pred_check
          %p378 = pneg %p149
        $region62: #{tpu_custom_call.1} parent=51 // pred_check_branch
          %380 = sbr.rel (%p378) target = $region64
        $region63: #{tpu_custom_call.1} parent=51 // pred_region
          %382 = dma.done [#allocation6], 18432
        $region64: #{tpu_custom_call.1} parent=51 // pred_fallthru
          _
        // Predicated region
        $region65: #{tpu_custom_call.1} parent=51 // pred_check
          %p383 = pneg %p191
        $region66: #{tpu_custom_call.1} parent=51 // pred_check_branch
          %385 = sbr.rel (%p383) target = $region68
        $region67: #{tpu_custom_call.1} parent=51 // pred_region
          %387 = dma.done [#allocation9], 4096
        $region68: #{tpu_custom_call.1} parent=51 // pred_fallthru
          _
        %p388 = scmp.lt.s32.totalorder %s29, 3
        %s389 = scalar_select %p388, %s29, 3
        %s390 = smul.addr %s389, 2
        %s391 = smul.addr %s390, 8
        %s392 = scalar_lea.vmem %s0, %s391
        %p393 = pneg %p50
        %p394 = pneg %p47
        %s395 = sand.u32 %s63, 1
        %s396 = scalar_lea.sflag [#allocation3], %s395
        %s397 = sand.u32 %s63, 1
        %s398 = smul.addr %s397, 16
        %s399 = scalar_lea.vmem [#allocation2], %s398
        %p400 = pneg %p76
        %p401 = pneg %p73
        %p402 = scmp.lt.s32.totalorder %s29, 3
        %s403 = scalar_select %p402, %s29, 3
        %s404 = smul.addr %s403, 2
        %s405 = smul.addr %s404, 8
        %s406 = scalar_lea.vmem %s2, %s405
        %p407 = pneg %p102
        %p408 = pneg %p99
        %s409 = sand.u32 %s29, 1
        %s410 = scalar_lea.sflag [#allocation6], %s409
        %s411 = sand.u32 %s115, 1
        %s412 = smul.addr %s411, 16
        %s413 = scalar_lea.vmem [#allocation5], %s412
        %p414 = pneg %p128
        %p415 = pneg %p125
        %p416 = pneg %p149
        %p417 = pneg %p146
        %p418 = pneg %p170
        %p419 = pneg %p167
        %p420 = pneg %p191
        %p421 = pneg %p188
        %p422 = pneg %p212
        %p423 = pneg %p209
        %p424 = pneg %p238
        %p425 = pneg %p235
        %s426 = sand.u32 %s225, 1
        %s427 = scalar_lea.sflag [#allocation4], %s426
        %s428 = sand.u32 %s225, 1
        %s429 = smul.addr %s428, 16
        %s430 = scalar_lea.vmem [#allocation10], %s429
        %p431 = scmp.lt.s32.totalorder %s29, 3
        %s432 = scalar_select %p431, %s29, 3
        %s433 = smul.addr %s432, 2
        %s434 = smul.addr %s433, 8
        %s435 = scalar_lea.vmem %s0, %s434
        %p436 = scmp.lt.s32.totalorder %s29, 3
        %s437 = scalar_select %p436, %s29, 3
        %s438 = smul.addr %s437, 2
        %s439 = smul.addr %s438, 8
        %s440 = scalar_lea.vmem %s2, %s439
        %v441 = vld [vmem:[%s435] sm:$0xff]
        %v442 = vld [vmem:[%s435 + $0x8] sm:$0xff]
        %v443 = vld [vmem:[#allocation7] sm:$0xff]
        %v444 = vld [vmem:[#allocation7 + $0x8] sm:$0xff]
        %v445 = vld [vmem:[#allocation7 + $0x10] sm:$0xff]
        %v446 = vld [vmem:[#allocation7 + $0x18] sm:$0xff]
        %v447 = vld [vmem:[#allocation7 + $0x20] sm:$0xff]
        %v448 = vld [vmem:[#allocation7 + $0x28] sm:$0xff]
        %v449 = vld [vmem:[#allocation7 + $0x30] sm:$0xff]
        %v450 = vld [vmem:[#allocation7 + $0x38] sm:$0xff]
        %v451 = vld [vmem:[#allocation7 + $0x40] sm:$0xff]
        %v452 = vld [vmem:[#allocation7 + $0x48] sm:$0xff]
        %v453 = vld [vmem:[#allocation7 + $0x50] sm:$0xff]
        %v454 = vld [vmem:[#allocation7 + $0x58] sm:$0xff]
        %v455 = vld [vmem:[#allocation7 + $0x60] sm:$0xff]
        %v456 = vld [vmem:[#allocation7 + $0x68] sm:$0xff]
        %v457 = vld [vmem:[#allocation7 + $0x70] sm:$0xff]
        %v458 = vld [vmem:[#allocation7 + $0x78] sm:$0xff]
        %v459 = vld [vmem:[#allocation7 + $0x80] sm:$0xff]
        %v460 = vld [vmem:[#allocation7 + $0x88] sm:$0xff]
        %v461 = vld [vmem:[#allocation7 + $0x90] sm:$0xff]
        %v462 = vld [vmem:[#allocation7 + $0x98] sm:$0xff]
        %v463 = vld [vmem:[#allocation7 + $0xa0] sm:$0xff]
        %v464 = vld [vmem:[#allocation7 + $0xa8] sm:$0xff]
        %v465 = vld [vmem:[#allocation7 + $0xb0] sm:$0xff]
        %v466 = vld [vmem:[#allocation7 + $0xb8] sm:$0xff]
        %v467 = vld [vmem:[#allocation7 + $0xc0] sm:$0xff]
        %v468 = vld [vmem:[#allocation7 + $0xc8] sm:$0xff]
        %v469 = vld [vmem:[#allocation7 + $0xd0] sm:$0xff]
        %v470 = vld [vmem:[#allocation7 + $0xd8] sm:$0xff]
        %v471 = vld [vmem:[#allocation7 + $0xe0] sm:$0xff]
        %v472 = vld [vmem:[#allocation7 + $0xe8] sm:$0xff]
        %v473 = vld [vmem:[#allocation7 + $0xf0] sm:$0xff]
        %v474 = vld [vmem:[#allocation7 + $0xf8] sm:$0xff]
        %v475 = vld [vmem:[#allocation7 + $0x100] sm:$0xff]
        %v476 = vld [vmem:[#allocation7 + $0x108] sm:$0xff]
        %v477 = vld [vmem:[#allocation7 + $0x110] sm:$0xff]
        %v478 = vld [vmem:[#allocation7 + $0x118] sm:$0xff]
        %v479 = vld [vmem:[#allocation7 + $0x120] sm:$0xff]
        %v480 = vld [vmem:[#allocation7 + $0x128] sm:$0xff]
        %v481 = vld [vmem:[#allocation7 + $0x130] sm:$0xff]
        %v482 = vld [vmem:[#allocation7 + $0x138] sm:$0xff]
        %v483 = vld [vmem:[#allocation7 + $0x140] sm:$0xff]
        %v484 = vld [vmem:[#allocation7 + $0x148] sm:$0xff]
        %v485 = vld [vmem:[#allocation7 + $0x150] sm:$0xff]
        %v486 = vld [vmem:[#allocation7 + $0x158] sm:$0xff]
        %v487 = vld [vmem:[#allocation7 + $0x160] sm:$0xff]
        %v488 = vld [vmem:[#allocation7 + $0x168] sm:$0xff]
        %v489 = vld [vmem:[#allocation7 + $0x170] sm:$0xff]
        %v490 = vld [vmem:[#allocation7 + $0x178] sm:$0xff]
        %v491 = vld [vmem:[#allocation7 + $0x180] sm:$0xff]
        %v492 = vld [vmem:[#allocation7 + $0x188] sm:$0xff]
        %v493 = vld [vmem:[#allocation7 + $0x190] sm:$0xff]
        %v494 = vld [vmem:[#allocation7 + $0x198] sm:$0xff]
        %v495 = vld [vmem:[#allocation7 + $0x1a0] sm:$0xff]
        %v496 = vld [vmem:[#allocation7 + $0x1a8] sm:$0xff]
        %v497 = vld [vmem:[#allocation7 + $0x1b0] sm:$0xff]
        %v498 = vld [vmem:[#allocation7 + $0x1b8] sm:$0xff]
        %v499 = vld [vmem:[#allocation7 + $0x1c0] sm:$0xff]
        %v500 = vld [vmem:[#allocation7 + $0x1c8] sm:$0xff]
        %v501 = vld [vmem:[#allocation7 + $0x1d0] sm:$0xff]
        %v502 = vld [vmem:[#allocation7 + $0x1d8] sm:$0xff]
        %v503 = vld [vmem:[#allocation7 + $0x1e0] sm:$0xff]
        %v504 = vld [vmem:[#allocation7 + $0x1e8] sm:$0xff]
        %v505 = vld [vmem:[#allocation7 + $0x1f0] sm:$0xff]
        %v506 = vld [vmem:[#allocation7 + $0x1f8] sm:$0xff]
        %v507 = vld [vmem:[#allocation7 + $0x200] sm:$0xff]
        %v508 = vld [vmem:[#allocation7 + $0x208] sm:$0xff]
        %v509 = vld [vmem:[#allocation7 + $0x210] sm:$0xff]
        %v510 = vld [vmem:[#allocation7 + $0x218] sm:$0xff]
        %v511 = vld [vmem:[#allocation7 + $0x220] sm:$0xff]
        %v512 = vld [vmem:[#allocation7 + $0x228] sm:$0xff]
        %v513 = vld [vmem:[#allocation7 + $0x230] sm:$0xff]
        %v514 = vld [vmem:[#allocation7 + $0x238] sm:$0xff]
        %v515 = vld [vmem:[#allocation7 + $0x240] sm:$0xff]
        %v516 = vld [vmem:[#allocation7 + $0x248] sm:$0xff]
        %v517 = vld [vmem:[#allocation7 + $0x250] sm:$0xff]
        %v518 = vld [vmem:[#allocation7 + $0x258] sm:$0xff]
        %v519 = vld [vmem:[#allocation7 + $0x260] sm:$0xff]
        %v520 = vld [vmem:[#allocation7 + $0x268] sm:$0xff]
        %v521 = vld [vmem:[#allocation7 + $0x270] sm:$0xff]
        %v522 = vld [vmem:[#allocation7 + $0x278] sm:$0xff]
        %v523 = vld [vmem:[#allocation7 + $0x280] sm:$0xff]
        %v524 = vld [vmem:[#allocation7 + $0x288] sm:$0xff]
        %v525 = vld [vmem:[#allocation7 + $0x290] sm:$0xff]
        %v526 = vld [vmem:[#allocation7 + $0x298] sm:$0xff]
        %v527 = vld [vmem:[#allocation7 + $0x2a0] sm:$0xff]
        %v528 = vld [vmem:[#allocation7 + $0x2a8] sm:$0xff]
        %v529 = vld [vmem:[#allocation7 + $0x2b0] sm:$0xff]
        %v530 = vld [vmem:[#allocation7 + $0x2b8] sm:$0xff]
        %v531 = vld [vmem:[#allocation7 + $0x2c0] sm:$0xff]
        %v532 = vld [vmem:[#allocation7 + $0x2c8] sm:$0xff]
        %v533 = vld [vmem:[#allocation7 + $0x2d0] sm:$0xff]
        %v534 = vld [vmem:[#allocation7 + $0x2d8] sm:$0xff]
        %v535 = vld [vmem:[#allocation7 + $0x2e0] sm:$0xff]
        %v536 = vld [vmem:[#allocation7 + $0x2e8] sm:$0xff]
        %v537 = vld [vmem:[#allocation7 + $0x2f0] sm:$0xff]
        %v538 = vld [vmem:[#allocation7 + $0x2f8] sm:$0xff]
        %v539 = vld [vmem:[#allocation7 + $0x300] sm:$0xff]
        %v540 = vld [vmem:[#allocation7 + $0x308] sm:$0xff]
        %v541 = vld [vmem:[#allocation7 + $0x310] sm:$0xff]
        %v542 = vld [vmem:[#allocation7 + $0x318] sm:$0xff]
        %v543 = vld [vmem:[#allocation7 + $0x320] sm:$0xff]
        %v544 = vld [vmem:[#allocation7 + $0x328] sm:$0xff]
        %v545 = vld [vmem:[#allocation7 + $0x330] sm:$0xff]
        %v546 = vld [vmem:[#allocation7 + $0x338] sm:$0xff]
        %v547 = vld [vmem:[#allocation7 + $0x340] sm:$0xff]
        %v548 = vld [vmem:[#allocation7 + $0x348] sm:$0xff]
        %v549 = vld [vmem:[#allocation7 + $0x350] sm:$0xff]
        %v550 = vld [vmem:[#allocation7 + $0x358] sm:$0xff]
        %v551 = vld [vmem:[#allocation7 + $0x360] sm:$0xff]
        %v552 = vld [vmem:[#allocation7 + $0x368] sm:$0xff]
        %v553 = vld [vmem:[#allocation7 + $0x370] sm:$0xff]
        %v554 = vld [vmem:[#allocation7 + $0x378] sm:$0xff]
        %v555 = vld [vmem:[#allocation7 + $0x380] sm:$0xff]
        %v556 = vld [vmem:[#allocation7 + $0x388] sm:$0xff]
        %v557 = vld [vmem:[#allocation7 + $0x390] sm:$0xff]
        %v558 = vld [vmem:[#allocation7 + $0x398] sm:$0xff]
        %v559 = vld [vmem:[#allocation7 + $0x3a0] sm:$0xff]
        %v560 = vld [vmem:[#allocation7 + $0x3a8] sm:$0xff]
        %v561 = vld [vmem:[#allocation7 + $0x3b0] sm:$0xff]
        %v562 = vld [vmem:[#allocation7 + $0x3b8] sm:$0xff]
        %v563 = vld [vmem:[#allocation7 + $0x3c0] sm:$0xff]
        %v564 = vld [vmem:[#allocation7 + $0x3c8] sm:$0xff]
        %v565 = vld [vmem:[#allocation7 + $0x3d0] sm:$0xff]
        %v566 = vld [vmem:[#allocation7 + $0x3d8] sm:$0xff]
        %v567 = vld [vmem:[#allocation7 + $0x3e0] sm:$0xff]
        %v568 = vld [vmem:[#allocation7 + $0x3e8] sm:$0xff]
        %v569 = vld [vmem:[#allocation7 + $0x3f0] sm:$0xff]
        %v570 = vld [vmem:[#allocation7 + $0x3f8] sm:$0xff]
        %v571 = vld [vmem:[#allocation7 + $0x400] sm:$0xff]
        %v572 = vld [vmem:[#allocation7 + $0x408] sm:$0xff]
        %v573 = vld [vmem:[#allocation7 + $0x410] sm:$0xff]
        %v574 = vld [vmem:[#allocation7 + $0x418] sm:$0xff]
        %v575 = vld [vmem:[#allocation7 + $0x420] sm:$0xff]
        %v576 = vld [vmem:[#allocation7 + $0x428] sm:$0xff]
        %v577 = vld [vmem:[#allocation7 + $0x430] sm:$0xff]
        %v578 = vld [vmem:[#allocation7 + $0x438] sm:$0xff]
        %v579 = vld [vmem:[#allocation7 + $0x440] sm:$0xff]
        %v580 = vld [vmem:[#allocation7 + $0x448] sm:$0xff]
        %v581 = vld [vmem:[#allocation7 + $0x450] sm:$0xff]
        %v582 = vld [vmem:[#allocation7 + $0x458] sm:$0xff]
        %v583 = vld [vmem:[#allocation7 + $0x460] sm:$0xff]
        %v584 = vld [vmem:[#allocation7 + $0x468] sm:$0xff]
        %v585 = vld [vmem:[#allocation7 + $0x470] sm:$0xff]
        %v586 = vld [vmem:[#allocation7 + $0x478] sm:$0xff]
        %587 = vmatpush.msra.mxu0 %v578
        %588 = vmatpush.msra.mxu0 %v569
        %589 = vmatpush.msra.mxu0 %v560
        %590 = vmatpush.msra.mxu0 %v551
        %591 = vmatpush.msra.mxu0 %v542
        %592 = vmatpush.msra.mxu0 %v533
        %593 = vmatpush.msra.mxu0 %v524
        %594 = vmatpush.msra.mxu0 %v515
        %595 = vmatpush.msra.mxu0 %v506
        %596 = vmatpush.msra.mxu0 %v497
        %597 = vmatpush.msra.mxu0 %v488
        %598 = vmatpush.msra.mxu0 %v479
        %599 = vmatpush.msra.mxu0 %v470
        %600 = vmatpush.msra.mxu0 %v461
        %601 = vmatpush.msra.mxu0 %v452
        %602 = vmatpush.msra.mxu0 %v443
        %603 = vmatmul.f32.gmra.mxu0 %v441
        %v604 = vpop.f32.mrf.mxu0
        %v605 = vadd.f32 0.0, %v604
        %606 = vmatmul.f32.gmra.mxu0 %v442
        %v607 = vpop.f32.mrf.mxu0
        %v608 = vadd.f32 0.0, %v607
        %609 = vdwg.mxu0
        %610 = vmatpush.msra.mxu0 %v579
        %611 = vmatpush.msra.mxu0 %v570
        %612 = vmatpush.msra.mxu0 %v561
        %613 = vmatpush.msra.mxu0 %v552
        %614 = vmatpush.msra.mxu0 %v543
        %615 = vmatpush.msra.mxu0 %v534
        %616 = vmatpush.msra.mxu0 %v525
        %617 = vmatpush.msra.mxu0 %v516
        %618 = vmatpush.msra.mxu0 %v507
        %619 = vmatpush.msra.mxu0 %v498
        %620 = vmatpush.msra.mxu0 %v489
        %621 = vmatpush.msra.mxu0 %v480
        %622 = vmatpush.msra.mxu0 %v471
        %623 = vmatpush.msra.mxu0 %v462
        %624 = vmatpush.msra.mxu0 %v453
        %625 = vmatpush.msra.mxu0 %v444
        %626 = vmatmul.f32.gmra.mxu0 %v441
        %v627 = vpop.f32.mrf.mxu0
        %v628 = vadd.f32 0.0, %v627
        %629 = vmatmul.f32.gmra.mxu0 %v442
        %v630 = vpop.f32.mrf.mxu0
        %v631 = vadd.f32 0.0, %v630
        %632 = vdwg.mxu0
        %633 = vmatpush.msra.mxu0 %v580
        %634 = vmatpush.msra.mxu0 %v571
        %635 = vmatpush.msra.mxu0 %v562
        %636 = vmatpush.msra.mxu0 %v553
        %637 = vmatpush.msra.mxu0 %v544
        %638 = vmatpush.msra.mxu0 %v535
        %639 = vmatpush.msra.mxu0 %v526
        %640 = vmatpush.msra.mxu0 %v517
        %641 = vmatpush.msra.mxu0 %v508
        %642 = vmatpush.msra.mxu0 %v499
        %643 = vmatpush.msra.mxu0 %v490
        %644 = vmatpush.msra.mxu0 %v481
        %645 = vmatpush.msra.mxu0 %v472
        %646 = vmatpush.msra.mxu0 %v463
        %647 = vmatpush.msra.mxu0 %v454
        %648 = vmatpush.msra.mxu0 %v445
        %649 = vmatmul.f32.gmra.mxu0 %v441
        %v650 = vpop.f32.mrf.mxu0
        %v651 = vadd.f32 0.0, %v650
        %652 = vmatmul.f32.gmra.mxu0 %v442
        %v653 = vpop.f32.mrf.mxu0
        %v654 = vadd.f32 0.0, %v653
        %655 = vdwg.mxu0
        %656 = vmatpush.msra.mxu0 %v581
        %657 = vmatpush.msra.mxu0 %v572
        %658 = vmatpush.msra.mxu0 %v563
        %659 = vmatpush.msra.mxu0 %v554
        %660 = vmatpush.msra.mxu0 %v545
        %661 = vmatpush.msra.mxu0 %v536
        %662 = vmatpush.msra.mxu0 %v527
        %663 = vmatpush.msra.mxu0 %v518
        %664 = vmatpush.msra.mxu0 %v509
        %665 = vmatpush.msra.mxu0 %v500
        %666 = vmatpush.msra.mxu0 %v491
        %667 = vmatpush.msra.mxu0 %v482
        %668 = vmatpush.msra.mxu0 %v473
        %669 = vmatpush.msra.mxu0 %v464
        %670 = vmatpush.msra.mxu0 %v455
        %671 = vmatpush.msra.mxu0 %v446
        %672 = vmatmul.f32.gmra.mxu0 %v441
        %v673 = vpop.f32.mrf.mxu0
        %v674 = vadd.f32 0.0, %v673
        %675 = vmatmul.f32.gmra.mxu0 %v442
        %v676 = vpop.f32.mrf.mxu0
        %v677 = vadd.f32 0.0, %v676
        %678 = vdwg.mxu0
        %679 = vmatpush.msra.mxu0 %v582
        %680 = vmatpush.msra.mxu0 %v573
        %681 = vmatpush.msra.mxu0 %v564
        %682 = vmatpush.msra.mxu0 %v555
        %683 = vmatpush.msra.mxu0 %v546
        %684 = vmatpush.msra.mxu0 %v537
        %685 = vmatpush.msra.mxu0 %v528
        %686 = vmatpush.msra.mxu0 %v519
        %687 = vmatpush.msra.mxu0 %v510
        %688 = vmatpush.msra.mxu0 %v501
        %689 = vmatpush.msra.mxu0 %v492
        %690 = vmatpush.msra.mxu0 %v483
        %691 = vmatpush.msra.mxu0 %v474
        %692 = vmatpush.msra.mxu0 %v465
        %693 = vmatpush.msra.mxu0 %v456
        %694 = vmatpush.msra.mxu0 %v447
        %695 = vmatmul.f32.gmra.mxu0 %v441
        %v696 = vpop.f32.mrf.mxu0
        %v697 = vadd.f32 0.0, %v696
        %698 = vmatmul.f32.gmra.mxu0 %v442
        %v699 = vpop.f32.mrf.mxu0
        %v700 = vadd.f32 0.0, %v699
        %701 = vdwg.mxu0
        %702 = vmatpush.msra.mxu0 %v583
        %703 = vmatpush.msra.mxu0 %v574
        %704 = vmatpush.msra.mxu0 %v565
        %705 = vmatpush.msra.mxu0 %v556
        %706 = vmatpush.msra.mxu0 %v547
        %707 = vmatpush.msra.mxu0 %v538
        %708 = vmatpush.msra.mxu0 %v529
        %709 = vmatpush.msra.mxu0 %v520
        %710 = vmatpush.msra.mxu0 %v511
        %711 = vmatpush.msra.mxu0 %v502
        %712 = vmatpush.msra.mxu0 %v493
        %713 = vmatpush.msra.mxu0 %v484
        %714 = vmatpush.msra.mxu0 %v475
        %715 = vmatpush.msra.mxu0 %v466
        %716 = vmatpush.msra.mxu0 %v457
        %717 = vmatpush.msra.mxu0 %v448
        %718 = vmatmul.f32.gmra.mxu0 %v441
        %v719 = vpop.f32.mrf.mxu0
        %v720 = vadd.f32 0.0, %v719
        %721 = vmatmul.f32.gmra.mxu0 %v442
        %v722 = vpop.f32.mrf.mxu0
        %v723 = vadd.f32 0.0, %v722
        %724 = vdwg.mxu0
        %725 = vmatpush.msra.mxu0 %v584
        %726 = vmatpush.msra.mxu0 %v575
        %727 = vmatpush.msra.mxu0 %v566
        %728 = vmatpush.msra.mxu0 %v557
        %729 = vmatpush.msra.mxu0 %v548
        %730 = vmatpush.msra.mxu0 %v539
        %731 = vmatpush.msra.mxu0 %v530
        %732 = vmatpush.msra.mxu0 %v521
        %733 = vmatpush.msra.mxu0 %v512
        %734 = vmatpush.msra.mxu0 %v503
        %735 = vmatpush.msra.mxu0 %v494
        %736 = vmatpush.msra.mxu0 %v485
        %737 = vmatpush.msra.mxu0 %v476
        %738 = vmatpush.msra.mxu0 %v467
        %739 = vmatpush.msra.mxu0 %v458
        %740 = vmatpush.msra.mxu0 %v449
        %741 = vmatmul.f32.gmra.mxu0 %v441
        %v742 = vpop.f32.mrf.mxu0
        %v743 = vadd.f32 0.0, %v742
        %744 = vmatmul.f32.gmra.mxu0 %v442
        %v745 = vpop.f32.mrf.mxu0
        %v746 = vadd.f32 0.0, %v745
        %747 = vdwg.mxu0
        %748 = vmatpush.msra.mxu0 %v585
        %749 = vmatpush.msra.mxu0 %v576
        %750 = vmatpush.msra.mxu0 %v567
        %751 = vmatpush.msra.mxu0 %v558
        %752 = vmatpush.msra.mxu0 %v549
        %753 = vmatpush.msra.mxu0 %v540
        %754 = vmatpush.msra.mxu0 %v531
        %755 = vmatpush.msra.mxu0 %v522
        %756 = vmatpush.msra.mxu0 %v513
        %757 = vmatpush.msra.mxu0 %v504
        %758 = vmatpush.msra.mxu0 %v495
        %759 = vmatpush.msra.mxu0 %v486
        %760 = vmatpush.msra.mxu0 %v477
        %761 = vmatpush.msra.mxu0 %v468
        %762 = vmatpush.msra.mxu0 %v459
        %763 = vmatpush.msra.mxu0 %v450
        %764 = vmatmul.f32.gmra.mxu0 %v441
        %v765 = vpop.f32.mrf.mxu0
        %v766 = vadd.f32 0.0, %v765
        %767 = vmatmul.f32.gmra.mxu0 %v442
        %v768 = vpop.f32.mrf.mxu0
        %v769 = vadd.f32 0.0, %v768
        %770 = vdwg.mxu0
        %771 = vmatpush.msra.mxu0 %v586
        %772 = vmatpush.msra.mxu0 %v577
        %773 = vmatpush.msra.mxu0 %v568
        %774 = vmatpush.msra.mxu0 %v559
        %775 = vmatpush.msra.mxu0 %v550
        %776 = vmatpush.msra.mxu0 %v541
        %777 = vmatpush.msra.mxu0 %v532
        %778 = vmatpush.msra.mxu0 %v523
        %779 = vmatpush.msra.mxu0 %v514
        %780 = vmatpush.msra.mxu0 %v505
        %781 = vmatpush.msra.mxu0 %v496
        %782 = vmatpush.msra.mxu0 %v487
        %783 = vmatpush.msra.mxu0 %v478
        %784 = vmatpush.msra.mxu0 %v469
        %785 = vmatpush.msra.mxu0 %v460
        %786 = vmatpush.msra.mxu0 %v451
        %787 = vmatmul.f32.gmra.mxu0 %v441
        %v788 = vpop.f32.mrf.mxu0
        %v789 = vadd.f32 0.0, %v788
        %790 = vmatmul.f32.gmra.mxu0 %v442
        %v791 = vpop.f32.mrf.mxu0
        %v792 = vadd.f32 0.0, %v791
        %793 = vdwg.mxu0
        %v794 = vld [vmem:[%s362] sm:$0xff]
        %v795 = vld [vmem:[%s362 + $0x8] sm:$0xff]
        %796 = vmatpush.msra.mxu0 %v769
        %797 = vmatpush.msra.mxu0 %v766
        %798 = vmatpush.msra.mxu0 %v746
        %799 = vmatpush.msra.mxu0 %v743
        %800 = vmatpush.msra.mxu0 %v723
        %801 = vmatpush.msra.mxu0 %v720
        %802 = vmatpush.msra.mxu0 %v700
        %803 = vmatpush.msra.mxu0 %v697
        %804 = vmatpush.msra.mxu0 %v677
        %805 = vmatpush.msra.mxu0 %v674
        %806 = vmatpush.msra.mxu0 %v654
        %807 = vmatpush.msra.mxu0 %v651
        %808 = vmatpush.msra.mxu0 %v631
        %809 = vmatpush.msra.mxu0 %v628
        %810 = vmatpush.msra.mxu0 %v608
        %811 = vmatpush.msra.mxu0 %v605
        %812 = vmatmul.f32.gmra.mxu0 %v794
        %v813 = vpop.f32.mrf.mxu0
        %v814 = vadd.f32 0.0, %v813
        %815 = vmatmul.f32.gmra.mxu0 %v795
        %v816 = vpop.f32.mrf.mxu0
        %v817 = vadd.f32 0.0, %v816
        %818 = vdwg.mxu0
        %v819 = vld [vmem:[%s440] sm:$0xff]
        %v820 = vld [vmem:[%s440 + $0x8] sm:$0xff]
        %822 = vset.pattern.permute.xlu0 0
        %823 = vperm.xlu0 %822, %v819
        %v824 = vpop.permute.xlu0 %823
        %827 = vset.pattern.permute.xlu0 0
        %828 = vperm.xlu0 %827, %v820
        %v829 = vpop.permute.xlu0 %828
        %v831 = vmul.f32 %v814, %v824
        %v832 = vmul.f32 %v817, %v829
        %v833 = vadd.f32 %v831, %v789
        %v834 = vadd.f32 %v832, %v792
        %v835 = vld [vmem:[%s5] sm:$0x1]
        %v837 = vperm.slane %v835, 0
        %v839 = vadd.f32 %v833, %v837
        %v840 = vadd.f32 %v834, %v837
        %v841 = vld [vmem:[%s372] sm:$0xff]
        %v842 = vld [vmem:[%s372 + $0x8] sm:$0xff]
        %vm843 = vcmask 130048
        %v845 = vsel %vm843, %v841, 0
        %v848 = vsel %vm843, %v842, 0
        %850 = vmatpush.msra.mxu0 0.0
        %851 = vmatpush.msra.mxu0 0.0
        %852 = vmatpush.msra.mxu0 0.0
        %853 = vmatpush.msra.mxu0 0.0
        %854 = vmatpush.msra.mxu0 0.0
        %855 = vmatpush.msra.mxu0 0.0
        %856 = vmatpush.msra.mxu0 0.0
        %857 = vmatpush.msra.mxu0 0.0
        %858 = vmatpush.msra.mxu0 0.0
        %859 = vmatpush.msra.mxu0 0.0
        %860 = vmatpush.msra.mxu0 0.0
        %861 = vmatpush.msra.mxu0 0.0
        %862 = vmatpush.msra.mxu0 0.0
        %863 = vmatpush.msra.mxu0 0.0
        %864 = vmatpush.msra.mxu0 %v840
        %865 = vmatpush.msra.mxu0 %v839
        %866 = vmatmul.f32.gmra.mxu0 %v845
        %v867 = vpop.f32.mrf.mxu0
        %v868 = vadd.f32 0.0, %v867
        %869 = vmatmul.f32.gmra.mxu0 %v848
        %v870 = vpop.f32.mrf.mxu0
        %v871 = vadd.f32 0.0, %v870
        %872 = vdwg.mxu0
        %v873 = vld [vmem:[#allocation8] sm:$0xff]
        %v874 = vld [vmem:[#allocation8 + $0x8] sm:$0xff]
        %v875 = vld [vmem:[#allocation8 + $0x10] sm:$0xff]
        %v876 = vld [vmem:[#allocation8 + $0x18] sm:$0xff]
        %v877 = vld [vmem:[#allocation8 + $0x20] sm:$0xff]
        %v878 = vld [vmem:[#allocation8 + $0x28] sm:$0xff]
        %v879 = vld [vmem:[#allocation8 + $0x30] sm:$0xff]
        %v880 = vld [vmem:[#allocation8 + $0x38] sm:$0xff]
        %v881 = vld [vmem:[#allocation8 + $0x40] sm:$0xff]
        %v882 = vld [vmem:[#allocation8 + $0x48] sm:$0xff]
        %v883 = vld [vmem:[#allocation8 + $0x50] sm:$0xff]
        %v884 = vld [vmem:[#allocation8 + $0x58] sm:$0xff]
        %v885 = vld [vmem:[#allocation8 + $0x60] sm:$0xff]
        %v886 = vld [vmem:[#allocation8 + $0x68] sm:$0xff]
        %v887 = vld [vmem:[#allocation8 + $0x70] sm:$0xff]
        %v888 = vld [vmem:[#allocation8 + $0x78] sm:$0xff]
        %v889 = vld [vmem:[#allocation8 + $0x80] sm:$0xff]
        %v890 = vld [vmem:[#allocation8 + $0x88] sm:$0xff]
        %v891 = vld [vmem:[#allocation8 + $0x90] sm:$0xff]
        %v892 = vld [vmem:[#allocation8 + $0x98] sm:$0xff]
        %v893 = vld [vmem:[#allocation8 + $0xa0] sm:$0xff]
        %v894 = vld [vmem:[#allocation8 + $0xa8] sm:$0xff]
        %v895 = vld [vmem:[#allocation8 + $0xb0] sm:$0xff]
        %v896 = vld [vmem:[#allocation8 + $0xb8] sm:$0xff]
        %v897 = vld [vmem:[#allocation8 + $0xc0] sm:$0xff]
        %v898 = vld [vmem:[#allocation8 + $0xc8] sm:$0xff]
        %v899 = vld [vmem:[#allocation8 + $0xd0] sm:$0xff]
        %v900 = vld [vmem:[#allocation8 + $0xd8] sm:$0xff]
        %v901 = vld [vmem:[#allocation8 + $0xe0] sm:$0xff]
        %v902 = vld [vmem:[#allocation8 + $0xe8] sm:$0xff]
        %v903 = vld [vmem:[#allocation8 + $0xf0] sm:$0xff]
        %v904 = vld [vmem:[#allocation8 + $0xf8] sm:$0xff]
        %v905 = vld [vmem:[%s7] sm:$0x1]
        %v907 = vperm.slane %v905, 0
        %909 = vmatpush.msra.mxu0 %v888
        %910 = vmatpush.msra.mxu0 %v887
        %911 = vmatpush.msra.mxu0 %v886
        %912 = vmatpush.msra.mxu0 %v885
        %913 = vmatpush.msra.mxu0 %v884
        %914 = vmatpush.msra.mxu0 %v883
        %915 = vmatpush.msra.mxu0 %v882
        %916 = vmatpush.msra.mxu0 %v881
        %917 = vmatpush.msra.mxu0 %v880
        %918 = vmatpush.msra.mxu0 %v879
        %919 = vmatpush.msra.mxu0 %v878
        %920 = vmatpush.msra.mxu0 %v877
        %921 = vmatpush.msra.mxu0 %v876
        %922 = vmatpush.msra.mxu0 %v875
        %923 = vmatpush.msra.mxu0 %v874
        %924 = vmatpush.msra.mxu0 %v873
        %925 = vmatmul.f32.gmra.mxu0 %v868
        %v926 = vpop.f32.mrf.mxu0
        %v927 = vadd.f32 %v907, %v926
        %928 = vmatmul.f32.gmra.mxu0 %v871
        %v929 = vpop.f32.mrf.mxu0
        %v930 = vadd.f32 %v907, %v929
        %931 = vdwg.mxu0
        %932 = vmatpush.msra.mxu0 %v904
        %933 = vmatpush.msra.mxu0 %v903
        %934 = vmatpush.msra.mxu0 %v902
        %935 = vmatpush.msra.mxu0 %v901
        %936 = vmatpush.msra.mxu0 %v900
        %937 = vmatpush.msra.mxu0 %v899
        %938 = vmatpush.msra.mxu0 %v898
        %939 = vmatpush.msra.mxu0 %v897
        %940 = vmatpush.msra.mxu0 %v896
        %941 = vmatpush.msra.mxu0 %v895
        %942 = vmatpush.msra.mxu0 %v894
        %943 = vmatpush.msra.mxu0 %v893
        %944 = vmatpush.msra.mxu0 %v892
        %945 = vmatpush.msra.mxu0 %v891
        %946 = vmatpush.msra.mxu0 %v890
        %947 = vmatpush.msra.mxu0 %v889
        %948 = vmatmul.f32.gmra.mxu0 %v839
        %v949 = vpop.f32.mrf.mxu0
        %v950 = vadd.f32 %v927, %v949
        %951 = vmatmul.f32.gmra.mxu0 %v840
        %v952 = vpop.f32.mrf.mxu0
        %v953 = vadd.f32 %v930, %v952
        %954 = vdwg.mxu0
        %955 = vst [vmem:[%s430] sm:$0xff] %v950
        %956 = vst [vmem:[%s430 + $0x8] sm:$0xff] %v953
        %s957 = sand.u32 %s225, 1
        %s958 = scalar_lea.sflag [#allocation4], %s957
        %s959 = sand.u32 %s225, 1
        %s960 = smul.addr %s959, 16
        %s961 = scalar_lea.vmem [#allocation10], %s960
        // Predicated region
        $region69: #{tpu_custom_call.1} parent=51 // pred_check
          %p962 = pneg %p235
        $region70: #{tpu_custom_call.1} parent=51 // pred_check_branch
          %964 = sbr.rel (%p962) target = $region72
        $region71: #{tpu_custom_call.1} parent=51 // pred_region
          %966 = vsyncadd %s958, 0
          %s967 = smul.addr %s29, 2
          %s968 = smul.addr %s967, 8
          %s969 = scalar_lea.hbm %s8, %s968
          %s970 = sshll.u32 %s961, 4
          %s971 = int_to_ptr.vmem [resolvable:$true] %s970
          %s972 = sshll.u32 %s969, 4
          %s973 = int_to_ptr.hbm [resolvable:$true] %s972
          %978 = dma.vmem_to_hbm [thread:$0]  %s971, 256, %s973, %s958, 128, 128, 8
        $region72: #{tpu_custom_call.1} parent=51 // pred_fallthru
          _
      $region52: #{tpu_custom_call.1} parent=5 // pred_fallthru
        _
      %p979 = scmp.le.s32.totalorder 2, %s24
      // Predicated region
      $region73: #{tpu_custom_call.1} parent=5 // pred_check
        %p980 = pneg %p979
      $region74: #{tpu_custom_call.1} parent=5 // pred_check_branch
        %982 = sbr.rel (%p980) target = $region76
      $region75: #{tpu_custom_call.1} parent=5 // pred_region
        %s983 = ssub.s32 %s24, 2
        // Predicated region
        $region77: #{tpu_custom_call.1} parent=75 // pred_check
          %p984 = pneg %p241
        $region78: #{tpu_custom_call.1} parent=75 // pred_check_branch
          %986 = sbr.rel (%p984) target = $region80
        $region79: #{tpu_custom_call.1} parent=75 // pred_region
          %s987 = sand.u32 %s226, 1
          %s988 = scalar_lea.sflag [#allocation4], %s987
          %s989 = sand.u32 %s226, 1
          %s990 = smul.addr %s989, 16
          %s991 = scalar_lea.vmem [#allocation10], %s990
          %993 = dma.done %s988, 256
        $region80: #{tpu_custom_call.1} parent=75 // pred_fallthru
          _
      $region76: #{tpu_custom_call.1} parent=5 // pred_fallthru
        _
    $region6: #{tpu_custom_call.1} parent=1 // loop_footer
      %s28 = sadd.s32 1, %s24
    $region7: #{tpu_custom_call.1} parent=1 // loop_footer_branch
      %23 = sbr.rel target = $region3
    $region8: #{tpu_custom_call.1} parent=1 // loop_exit
      _
    %994 = vsyncpa [#allocation3], 1
    %s995 = scalar_lea.sflag [#allocation3], 1
    %996 = vsyncpa %s995, 1
    %997 = vsyncpa [#allocation6], 1
    %s998 = scalar_lea.sflag [#allocation6], 1
    %999 = vsyncpa %s998, 1
    %1000 = vsyncpa [#allocation9], 1
    %1001 = vsyncpa [#allocation4], 1
    %s1002 = scalar_lea.sflag [#allocation4], 1
    %1003 = vsyncpa %s1002, 1

</llo_original>
